<compile_context>
chip_gen: v7x
topology: tpu7x:2x2x1
jax: 0.10.0
libtpu: 0.0.40
codegen_flags: <defaults>
</compile_context>

<pallas_src>
import functools

import jax
import jax.numpy as jnp
from jax.experimental import pallas as pl
from jax.experimental.pallas import tpu as pltpu

_LANES = 512          # last-dim width, multiple of 128 (lane-dense stores)
_BLOCK_ROWS = 1024    # rows per grid step -> (1024, 512) f32 = 2 MiB tile


def _baseq_elementwise(x, a, cap, s):
    """Exact PyTorch BASEQ.forward math on an array (a, cap, s Python floats)."""
    x = (jnp.abs(-x - a) - jnp.abs(x - a)) * 0.5   # clamp(x, -a, a), abs-trick
    x = jnp.where(x > cap, cap, x)                 # x[x > cap] = cap
    return jnp.floor(x / s) * s                    # base quantization


def _baseq_kernel(x_ref, o_ref, *, a, cap, s):
    x = x_ref[...].astype(jnp.float32)
    o_ref[...] = _baseq_elementwise(x, a, cap, s).astype(o_ref.dtype)


def baseq(x, lvls, activation_range, *, block_rows=_BLOCK_ROWS, lanes=_LANES):
    """Apply BASEQ to an NCHW (or any-shape) float array via a Pallas kernel."""
    steps = 2.0 * activation_range / lvls
    a = float(activation_range)
    cap = a - 0.1 * steps
    orig_shape = x.shape
    orig_dtype = x.dtype

    flat = x.reshape(-1)
    n = flat.shape[0]

    # Kernel handles the lane-divisible bulk; the (< lanes) tail, if any, is
    # done in plain JAX (fused, negligible).  No full-array pad/copy.
    bulk = (n // lanes) * lanes
    if bulk == 0:
        # Tiny input: a single lane-dense row doesn't even exist; plain JAX.
        return _baseq_elementwise(flat, a, cap, steps).reshape(orig_shape)

    rows = bulk // lanes
    block_rows = min(block_rows, rows)  # == rows (full dim) when rows < 1024

    x2d = (flat if bulk == n else flat[:bulk]).reshape(rows, lanes)

    kernel = functools.partial(_baseq_kernel, a=a, cap=cap, s=steps)

    out2d = pl.pallas_call(
        kernel,
        out_shape=jax.ShapeDtypeStruct((rows, lanes), orig_dtype),
        grid_spec=pltpu.PrefetchScalarGridSpec(
            num_scalar_prefetch=0,
            grid=(pl.cdiv(rows, block_rows),),
            in_specs=[pl.BlockSpec((block_rows, lanes), lambda i: (i, 0))],
            out_specs=pl.BlockSpec((block_rows, lanes), lambda i: (i, 0)),
        ),
        compiler_params=pltpu.CompilerParams(
            dimension_semantics=("parallel",),
        ),
    )(x2d)

    out_flat = out2d.reshape(-1)
    if bulk != n:
        tail = _baseq_elementwise(flat[bulk:].astype(jnp.float32), a, cap,
                                  steps).astype(orig_dtype)
        out_flat = jnp.concatenate([out_flat, tail])
    return out_flat.reshape(orig_shape)


def baseq_reference(x, lvls, activation_range):
    """Pure-JAX reference mirroring the PyTorch module line-by-line."""
    steps = 2.0 * activation_range / lvls
    a = activation_range
    x = (jnp.abs(-x - a) - jnp.abs(x - a)) / 2.0
    cap = a - 0.1 * steps
    x = jnp.where(x > cap, cap, x)
    return jnp.floor(x / steps) * steps


if __name__ == "__main__":
    # Module hyperparameters (deterministic, set in-script)
    lvls = 16
    activation_range = 1.0

    key = jax.random.PRNGKey(0)
    # NCHW input, small shape consistent with an image-processing conv net
    x = jax.random.normal(key, (2, 4, 16, 16), dtype=jnp.float32) * 2.0

    y = baseq(x, lvls, activation_range)
    y = jax.block_until_ready(y)

    y_ref = baseq_reference(x, lvls, activation_range)
    assert y.shape == x.shape and y.dtype == x.dtype
    assert jnp.allclose(y, y_ref, atol=1e-6), "mismatch vs reference"

    print("KERNEL_OK")
</pallas_src>

<mosaic_0001>
module attributes {stable_mosaic.version = 11 : i64} {
  func.func @_baseq_kernel(%arg0: i32, %arg1: memref<4x512xf32, #tpu.memory_space<vmem>>, %arg2: memref<4x512xf32, #tpu.memory_space<vmem>>) attributes {dimension_semantics = [#tpu.dimension_semantics<parallel>], iteration_bounds = array<i64: 1>, scalar_prefetch = 0 : i64, scratch_operands = 0 : i64, tpu.core_type = #tpu.core_type<tc>, window_params = [{transform_indices = @transform_0, window_bounds = array<i64: 4, 512>}, {transform_indices = @transform_1, window_bounds = array<i64: 4, 512>}]} {
    %c0 = arith.constant 0 : index
    %c0_0 = arith.constant 0 : index
    %0 = vector.load %arg1[%c0, %c0_0] : memref<4x512xf32, #tpu.memory_space<vmem>>, vector<4x512xf32>
    %cst = arith.constant 0.000000e+00 : f32
    %1 = vector.broadcast %cst : f32 to vector<4x512xf32>
    %2 = arith.subf %1, %0 : vector<4x512xf32>
    %cst_1 = arith.constant 1.000000e+00 : f32
    %3 = vector.broadcast %cst_1 : f32 to vector<4x512xf32>
    %4 = arith.subf %2, %3 : vector<4x512xf32>
    %5 = math.absf %4 : vector<4x512xf32>
    %cst_2 = arith.constant 1.000000e+00 : f32
    %6 = vector.broadcast %cst_2 : f32 to vector<4x512xf32>
    %7 = arith.subf %0, %6 : vector<4x512xf32>
    %8 = math.absf %7 : vector<4x512xf32>
    %9 = arith.subf %5, %8 : vector<4x512xf32>
    %cst_3 = arith.constant 5.000000e-01 : f32
    %10 = vector.broadcast %cst_3 : f32 to vector<4x512xf32>
    %11 = arith.mulf %9, %10 : vector<4x512xf32>
    %cst_4 = arith.constant 9.875000e-01 : f32
    %12 = vector.broadcast %cst_4 : f32 to vector<4x512xf32>
    %13 = arith.cmpf ogt, %11, %12 : vector<4x512xf32>
    %cst_5 = arith.constant 9.875000e-01 : f32
    %14 = vector.broadcast %cst_5 : f32 to vector<4x512xf32>
    %15 = arith.select %13, %14, %11 : vector<4x512xi1>, vector<4x512xf32>
    %cst_6 = arith.constant 1.250000e-01 : f32
    %16 = vector.broadcast %cst_6 : f32 to vector<4x512xf32>
    %17 = arith.divf %15, %16 : vector<4x512xf32>
    %18 = math.floor %17 : vector<4x512xf32>
    %cst_7 = arith.constant 1.250000e-01 : f32
    %19 = vector.broadcast %cst_7 : f32 to vector<4x512xf32>
    %20 = arith.mulf %18, %19 : vector<4x512xf32>
    %c0_8 = arith.constant 0 : index
    %c0_9 = arith.constant 0 : index
    %21 = vector.load %arg2[%c0_8, %c0_9] : memref<4x512xf32, #tpu.memory_space<vmem>>, vector<4x512xf32>
    tpu.vector_store %arg2[%c0_8, %c0_9], %20 {strides = array<i32>} : memref<4x512xf32, #tpu.memory_space<vmem>>, vector<4x512xf32>,
    return
  }
  func.func @transform_0(%arg0: i32) -> (i32, i32) {
    %c0_i32 = arith.constant 0 : i32
    %c0_i32_0 = arith.constant 0 : i32
    return %arg0, %c0_i32 : i32, i32
  }
  func.func @transform_1(%arg0: i32) -> (i32, i32) {
    %c0_i32 = arith.constant 0 : i32
    %c0_i32_0 = arith.constant 0 : i32
    return %arg0, %c0_i32 : i32, i32
  }
}

</mosaic_0001>

<llo_original>
// kernel: tpu_custom_call.1
$region0: #{tpu_custom_call.1}
  #allocation0 [shape = 'u32[]', space=smem, size = 0x4, offset = 0x4, fixed_abs, tag = 'smem constant byte address 0x4 - core index']
  #allocation1 [shape = 'u32[144,128]{1,0:T(1,128)}', space=vmem, size = 0x12000, scoped, tag = 'internal scratch']
  %s0 = inlined_call_operand.hbm [shape: f32[4,512], index: 0, kind: input, shape index: {}]
  %s1 = inlined_call_operand.hbm [shape: f32[4,512], index: 1, kind: output, shape index: {}]
  %s2 = sld [smem:[#allocation0]]
  $region18: #{tpu_custom_call.1} parent=0
    _
  %s4 = ssub.s32 1, %s2
  %s5 = scalar_select 0, %s4, %s2
  $region1: #{tpu_custom_call.1} parent=0
    #allocation2 [shape = 'u8[8192]{0}', space=vmem, size = 0x2000, scoped, tag = 'input window, operand 0, single buffered']
    #allocation3 [shape = 's32[1]{0}', space=sflag, size = 0x4, scoped, tag = 'scoped memory for tpu_custom_call.1']
    #allocation4 [shape = 's32[1]{0}', space=sflag, size = 0x4, scoped, tag = 'scoped memory for tpu_custom_call.1']
    #allocation5 [shape = 'u8[8192]{0}', space=vmem, size = 0x2000, scoped, tag = 'output window, operand 0, single buffered']
    %6 = vsyncpa [#allocation3], 0
    %7 = vsyncpa [#allocation4], 0
    // Predicated region
    $region2: #{tpu_custom_call.1} parent=1 // pred_check
      _
    $region3: #{tpu_custom_call.1} parent=1 // pred_check_branch
      %9 = sbr.rel (0) target = $region5
    $region4: #{tpu_custom_call.1} parent=1 // pred_region
      %s11 = ssub.s32 256, 256
      %12 = vsyncadd [#allocation3], %s11
      %s14 = sshll.u32 [#allocation2], 4
      %s15 = int_to_ptr.vmem [resolvable:$true] %s14
      %17 = dma.hbm_to_vmem [thread:$0]  %s0, 256, %s15, [#allocation3]
    $region5: #{tpu_custom_call.1} parent=1 // pred_fallthru
      _
    // Predicated region
    $region6: #{tpu_custom_call.1} parent=1 // pred_check
      _
    $region7: #{tpu_custom_call.1} parent=1 // pred_check_branch
      %19 = sbr.rel (0) target = $region9
    $region8: #{tpu_custom_call.1} parent=1 // pred_region
      %20 = dma.done [#allocation3], 256
    $region9: #{tpu_custom_call.1} parent=1 // pred_fallthru
      _
    %v21 = vld [vmem:[#allocation2] sm:$0xff]
    %v22 = vld [vmem:[#allocation2 + $0x8] sm:$0xff]
    %v23 = vsub.f32 0.0, %v21
    %v24 = vsub.f32 0.0, %v22
    %v25 = vsub.f32 %v23, 1.0
    %v26 = vsub.f32 %v24, 1.0
    %v27 = vand.u32 2147483647, %v25
    %v28 = vand.u32 2147483647, %v26
    %v29 = vsub.f32 %v21, 1.0
    %v30 = vsub.f32 %v22, 1.0
    %v31 = vand.u32 2147483647, %v29
    %v32 = vand.u32 2147483647, %v30
    %v33 = vsub.f32 %v27, %v31
    %v34 = vsub.f32 %v28, %v32
    %v35 = vmul.f32 %v33, 0.5
    %v36 = vmul.f32 %v34, 0.5
    %vm37 = vcmp.gt.f32.partialorder %v35, 0.9875
    %vm38 = vcmp.gt.f32.partialorder %v36, 0.9875
    %v39 = vsel %vm37, 0.9875, %v35
    %v40 = vsel %vm38, 0.9875, %v36
    %v41 = vrcp.pop 0.125
    %v42 = vmul.f32 %v39, %v41
    %v43 = vmul.f32 %v40, %v41
    %v44 = vfloor.f32 %v42
    %v45 = vfloor.f32 %v43
    %v46 = vmul.f32 %v44, 0.125
    %v47 = vmul.f32 %v45, 0.125
    %48 = vst [vmem:[#allocation5] sm:$0xff] %v46
    %49 = vst [vmem:[#allocation5 + $0x8] sm:$0xff] %v47
    // Predicated region
    $region10: #{tpu_custom_call.1} parent=1 // pred_check
      _
    $region11: #{tpu_custom_call.1} parent=1 // pred_check_branch
      %51 = sbr.rel (0) target = $region13
    $region12: #{tpu_custom_call.1} parent=1 // pred_region
      %s53 = ssub.s32 256, 256
      %54 = vsyncadd [#allocation4], %s53
      %s56 = sshll.u32 [#allocation5], 4
      %s57 = int_to_ptr.vmem [resolvable:$true] %s56
      %59 = dma.vmem_to_hbm [thread:$0]  %s57, 256, %s1, [#allocation4]
    $region13: #{tpu_custom_call.1} parent=1 // pred_fallthru
      _
    // Predicated region
    $region14: #{tpu_custom_call.1} parent=1 // pred_check
      _
    $region15: #{tpu_custom_call.1} parent=1 // pred_check_branch
      %61 = sbr.rel (0) target = $region17
    $region16: #{tpu_custom_call.1} parent=1 // pred_region
      %62 = dma.done [#allocation4], 256
    $region17: #{tpu_custom_call.1} parent=1 // pred_fallthru
      _
    %63 = vsyncpa [#allocation3], 1
    %64 = vsyncpa [#allocation4], 1

</llo_original>
